<compile_context>
chip_gen: v5e
topology: v5e:2x2
jax: 0.10.0
libtpu: 0.0.40
codegen_flags: <defaults>
</compile_context>

<pallas_src>
import functools

import jax
import jax.numpy as jnp
from jax import lax
from jax.experimental import pallas as pl
from jax.experimental.pallas import tpu as pltpu

LANE = 128
SUBLANE = 8
MAX_BLOCK_ROWS = 8192   # (8192, 128) f32 tile = 4 MiB / operand / buffer
                        # -> 16 MiB of double-buffered inputs; we raise the
                        #    scoped-VMEM limit to 32 MiB (safe on v5e/v6e/v7x).
NUM_CORE_SPLITS = 2     # leading "parallel" grid axis: uses both TensorCores
                        # on v7x; runs serially (and harmlessly) on v5e/v6e.
VMEM_LIMIT_BYTES = 32 * 1024 * 1024


def _dice_partial_kernel(x_ref, y_ref, inter_ref, total_ref, *,
                         block_rows, blocks_per_split, total_rows, needs_mask):
    c = pl.program_id(0)   # core-split index            ("parallel")
    i = pl.program_id(1)   # reduction step within split ("arbitrary")

    @pl.when(i == 0)
    def _():
        inter_ref[...] = jnp.zeros_like(inter_ref)
        total_ref[...] = jnp.zeros_like(total_ref)

    x = x_ref[...].astype(jnp.float32)
    y = y_ref[...].astype(jnp.float32)

    prod = x * y
    ssum = x + y
    if needs_mask:
        # Rows past `total_rows` belong either to a partial tail block
        # (undefined data) or a clamped duplicate block (core-split overhang);
        # their contribution must be exactly zero.  `where` also squashes any
        # NaN/Inf produced by the undefined tail data.
        b = c * blocks_per_split + i                    # unclamped block index
        row_ids = b * block_rows + lax.broadcasted_iota(
            jnp.int32, (block_rows, LANE), 0)
        valid = row_ids < total_rows
        prod = jnp.where(valid, prod, 0.0)
        ssum = jnp.where(valid, ssum, 0.0)

    # VPU-only partial reduction into vreg-shaped (8, 128) accumulators kept
    # resident in the output blocks; the cross-lane/sublane reduce happens
    # once, outside the kernel.  The reshape keeps the (8,128) vreg layout,
    # so the sum over axis 0 is just plain vreg adds.
    inter_ref[...] += prod.reshape(-1, SUBLANE, LANE).sum(axis=0)
    total_ref[...] += ssum.reshape(-1, SUBLANE, LANE).sum(axis=0)


def dice_loss(inputs, targets, smooth=1.0):
    """Pallas equivalent of DiceLoss.forward (returns a scalar f32 loss)."""
    x = inputs.reshape(-1)
    y = targets.reshape(-1)
    n = x.shape[0]

    # Pad only to the minimal (8, 128)-tile granularity.  Zero padding is
    # exact for both sum(x*y) and sum(x+y); block-level alignment is handled
    # in-kernel so we never materialize a block-sized pad copy in HBM.
    min_elems = SUBLANE * LANE
    n_pad = pl.cdiv(n, min_elems) * min_elems
    if n_pad != n:
        x = jnp.pad(x, (0, n_pad - n))
        y = jnp.pad(y, (0, n_pad - n))

    rows = n_pad // LANE                       # multiple of 8
    x2 = x.reshape(rows, LANE)
    y2 = y.reshape(rows, LANE)

    block_rows = min(MAX_BLOCK_ROWS, rows)     # multiple of 8
    num_blocks = pl.cdiv(rows, block_rows)
    num_splits = min(NUM_CORE_SPLITS, num_blocks)
    blocks_per_split = pl.cdiv(num_blocks, num_splits)
    needs_clamp = num_splits * blocks_per_split != num_blocks
    needs_mask = num_splits * blocks_per_split * block_rows != rows

    def in_index_map(c, i):
        b = c * blocks_per_split + i
        if needs_clamp:
            # Overhang (c, i) pairs re-read the last real block; the kernel
            # masks their contribution to zero.
            b = jnp.minimum(b, num_blocks - 1)
        return (b, 0)

    kernel = functools.partial(
        _dice_partial_kernel,
        block_rows=block_rows,
        blocks_per_split=blocks_per_split,
        total_rows=rows,
        needs_mask=needs_mask,
    )

    part_shape = jax.ShapeDtypeStruct((num_splits * SUBLANE, LANE), jnp.float32)
    inter_parts, total_parts = pl.pallas_call(
        kernel,
        out_shape=(part_shape, part_shape),
        grid_spec=pltpu.PrefetchScalarGridSpec(
            num_scalar_prefetch=0,
            grid=(num_splits, blocks_per_split),
            in_specs=[
                pl.BlockSpec((block_rows, LANE), in_index_map),
                pl.BlockSpec((block_rows, LANE), in_index_map),
            ],
            out_specs=(
                pl.BlockSpec((SUBLANE, LANE), lambda c, i: (c, 0)),
                pl.BlockSpec((SUBLANE, LANE), lambda c, i: (c, 0)),
            ),
        ),
        compiler_params=pltpu.CompilerParams(
            dimension_semantics=("parallel", "arbitrary"),
            vmem_limit_bytes=VMEM_LIMIT_BYTES,
        ),
    )(x2, y2)

    intersection = jnp.sum(inter_parts)
    total = jnp.sum(total_parts)               # = sum(x) + sum(y)
    dice = (2.0 * intersection + smooth) / (total + smooth)
    return 1.0 - dice


def dice_loss_ref(inputs, targets, smooth=1.0):
    x = inputs.reshape(-1).astype(jnp.float32)
    y = targets.reshape(-1).astype(jnp.float32)
    intersection = jnp.sum(x * y)
    dice = (2.0 * intersection + smooth) / (jnp.sum(x) + jnp.sum(y) + smooth)
    return 1.0 - dice


if __name__ == "__main__":
    key = jax.random.PRNGKey(0)
    k1, k2 = jax.random.split(key)
    # Typical segmentation use: predicted probabilities vs. binary masks (NCHW).
    inputs = jax.nn.sigmoid(jax.random.normal(k1, (2, 4, 16, 16), jnp.float32))
    targets = (jax.random.uniform(k2, (2, 4, 16, 16)) > 0.5).astype(jnp.float32)

    loss = jax.block_until_ready(dice_loss(inputs, targets, smooth=1.0))
    ref = jax.block_until_ready(dice_loss_ref(inputs, targets, smooth=1.0))

    assert jnp.allclose(loss, ref, atol=1e-5, rtol=1e-5), (loss, ref)
    print("KERNEL_OK")
</pallas_src>

<mosaic_0001>
module attributes {stable_mosaic.version = 11 : i64} {
  func.func @_dice_partial_kernel(%arg0: i32, %arg1: i32, %arg2: memref<16x128xf32, #tpu.memory_space<vmem>>, %arg3: memref<16x128xf32, #tpu.memory_space<vmem>>, %arg4: memref<8x128xf32, #tpu.memory_space<vmem>>, %arg5: memref<8x128xf32, #tpu.memory_space<vmem>>) attributes {dimension_semantics = [#tpu.dimension_semantics<parallel>, #tpu.dimension_semantics<arbitrary>], iteration_bounds = array<i64: 1, 1>, scalar_prefetch = 0 : i64, scratch_operands = 0 : i64, tpu.core_type = #tpu.core_type<tc>, window_params = [{transform_indices = @transform_0, window_bounds = array<i64: 16, 128>}, {transform_indices = @transform_1, window_bounds = array<i64: 16, 128>}, {transform_indices = @transform_2, window_bounds = array<i64: 8, 128>}, {transform_indices = @transform_3, window_bounds = array<i64: 8, 128>}]} {
    %c0_i32 = arith.constant 0 : i32
    %0 = arith.cmpi eq, %arg1, %c0_i32 : i32
    %1 = arith.extui %0 : i1 to i32
    %c0_i32_0 = arith.constant 0 : i32
    %2 = arith.cmpi ne, %1, %c0_i32_0 : i32
    scf.if %2 {
      %cst_13 = arith.constant 0.000000e+00 : f32
      %17 = vector.broadcast %cst_13 : f32 to vector<8x128xf32>
      %c0_14 = arith.constant 0 : index
      %c0_15 = arith.constant 0 : index
      %18 = vector.load %arg4[%c0_14, %c0_15] : memref<8x128xf32, #tpu.memory_space<vmem>>, vector<8x128xf32>
      tpu.vector_store %arg4[%c0_14, %c0_15], %17 {strides = array<i32>} : memref<8x128xf32, #tpu.memory_space<vmem>>, vector<8x128xf32>,
      %cst_16 = arith.constant 0.000000e+00 : f32
      %19 = vector.broadcast %cst_16 : f32 to vector<8x128xf32>
      %c0_17 = arith.constant 0 : index
      %c0_18 = arith.constant 0 : index
      %20 = vector.load %arg5[%c0_17, %c0_18] : memref<8x128xf32, #tpu.memory_space<vmem>>, vector<8x128xf32>
      tpu.vector_store %arg5[%c0_17, %c0_18], %19 {strides = array<i32>} : memref<8x128xf32, #tpu.memory_space<vmem>>, vector<8x128xf32>,
    } else {
    }
    %c0 = arith.constant 0 : index
    %c0_1 = arith.constant 0 : index
    %3 = vector.load %arg2[%c0, %c0_1] : memref<16x128xf32, #tpu.memory_space<vmem>>, vector<16x128xf32>
    %c0_2 = arith.constant 0 : index
    %c0_3 = arith.constant 0 : index
    %4 = vector.load %arg3[%c0_2, %c0_3] : memref<16x128xf32, #tpu.memory_space<vmem>>, vector<16x128xf32>
    %5 = arith.mulf %3, %4 : vector<16x128xf32>
    %6 = arith.addf %3, %4 : vector<16x128xf32>
    %c0_4 = arith.constant 0 : index
    %c0_5 = arith.constant 0 : index
    %7 = vector.load %arg4[%c0_4, %c0_5] : memref<8x128xf32, #tpu.memory_space<vmem>>, vector<8x128xf32>
    %8 = vector.shape_cast %5 : vector<16x128xf32> to vector<2x8x128xf32>
    %cst = arith.constant dense<0.000000e+00> : vector<8x128xf32>
    %9 = vector.multi_reduction <add>, %8, %cst [0] : vector<2x8x128xf32> to vector<8x128xf32>
    %10 = arith.addf %7, %9 : vector<8x128xf32>
    %c0_6 = arith.constant 0 : index
    %c0_7 = arith.constant 0 : index
    %11 = vector.load %arg4[%c0_6, %c0_7] : memref<8x128xf32, #tpu.memory_space<vmem>>, vector<8x128xf32>
    tpu.vector_store %arg4[%c0_6, %c0_7], %10 {strides = array<i32>} : memref<8x128xf32, #tpu.memory_space<vmem>>, vector<8x128xf32>,
    %c0_8 = arith.constant 0 : index
    %c0_9 = arith.constant 0 : index
    %12 = vector.load %arg5[%c0_8, %c0_9] : memref<8x128xf32, #tpu.memory_space<vmem>>, vector<8x128xf32>
    %13 = vector.shape_cast %6 : vector<16x128xf32> to vector<2x8x128xf32>
    %cst_10 = arith.constant dense<0.000000e+00> : vector<8x128xf32>
    %14 = vector.multi_reduction <add>, %13, %cst_10 [0] : vector<2x8x128xf32> to vector<8x128xf32>
    %15 = arith.addf %12, %14 : vector<8x128xf32>
    %c0_11 = arith.constant 0 : index
    %c0_12 = arith.constant 0 : index
    %16 = vector.load %arg5[%c0_11, %c0_12] : memref<8x128xf32, #tpu.memory_space<vmem>>, vector<8x128xf32>
    tpu.vector_store %arg5[%c0_11, %c0_12], %15 {strides = array<i32>} : memref<8x128xf32, #tpu.memory_space<vmem>>, vector<8x128xf32>,
    return
  }
  func.func @transform_0(%arg0: i32, %arg1: i32) -> (i32, i32) {
    %c1_i32 = arith.constant 1 : i32
    %0 = arith.muli %arg0, %c1_i32 : i32
    %1 = arith.addi %0, %arg1 : i32
    %c0_i32 = arith.constant 0 : i32
    %c0_i32_0 = arith.constant 0 : i32
    return %1, %c0_i32 : i32, i32
  }
  func.func @transform_1(%arg0: i32, %arg1: i32) -> (i32, i32) {
    %c1_i32 = arith.constant 1 : i32
    %0 = arith.muli %arg0, %c1_i32 : i32
    %1 = arith.addi %0, %arg1 : i32
    %c0_i32 = arith.constant 0 : i32
    %c0_i32_0 = arith.constant 0 : i32
    return %1, %c0_i32 : i32, i32
  }
  func.func @transform_2(%arg0: i32, %arg1: i32) -> (i32, i32) {
    %c0_i32 = arith.constant 0 : i32
    %c0_i32_0 = arith.constant 0 : i32
    return %arg0, %c0_i32 : i32, i32
  }
  func.func @transform_3(%arg0: i32, %arg1: i32) -> (i32, i32) {
    %c0_i32 = arith.constant 0 : i32
    %c0_i32_0 = arith.constant 0 : i32
    return %arg0, %c0_i32 : i32, i32
  }
}

</mosaic_0001>

<llo_original>
// kernel: tpu_custom_call.1
$region0: #{tpu_custom_call.1}
  #allocation0 [shape = 'u32[]', space=smem, size = 0x4, offset = 0x4, fixed_abs, tag = 'smem constant byte address 0x4 - core index']
  #allocation1 [shape = 'u32[72,128]{1,0:T(1,128)}', space=vmem, size = 0x9000, scoped, tag = 'internal scratch']
  %s0 = inlined_call_operand.hbm [shape: f32[16,128], index: 0, kind: input, shape index: {}]
  %s1 = inlined_call_operand.hbm [shape: f32[16,128], index: 1, kind: input, shape index: {}]
  %s2 = inlined_call_operand.hbm [shape: f32[8,128], index: 2, kind: output, shape index: {0}]
  %s3 = inlined_call_operand.hbm [shape: f32[8,128], index: 3, kind: output, shape index: {1}]
  %4 = xla_tuple %s2, %s3
  %s5 = sld [smem:[#allocation0]]
  $region38: #{tpu_custom_call.1} parent=0
    _
  %s7 = ssub.s32 1, %s5
  %s8 = scalar_select 0, %s7, %s5
  $region1: #{tpu_custom_call.1} parent=0
    #allocation2 [shape = 'u8[8192]{0}', space=vmem, size = 0x2000, scoped, tag = 'input window, operand 0, single buffered']
    #allocation3 [shape = 's32[1]{0}', space=sflag, size = 0x4, scoped, tag = 'scoped memory for tpu_custom_call.1']
    #allocation4 [shape = 's32[1]{0}', space=sflag, size = 0x4, scoped, tag = 'scoped memory for tpu_custom_call.1']
    #allocation5 [shape = 'u8[8192]{0}', space=vmem, size = 0x2000, scoped, tag = 'input window, operand 1, single buffered']
    #allocation6 [shape = 's32[1]{0}', space=sflag, size = 0x4, scoped, tag = 'scoped memory for tpu_custom_call.1']
    #allocation7 [shape = 'u8[4096]{0}', space=vmem, size = 0x1000, scoped, tag = 'output window, operand 0, single buffered']
    #allocation8 [shape = 'u8[4096]{0}', space=vmem, size = 0x1000, scoped, tag = 'output window, operand 1, single buffered']
    #allocation9 [shape = 's32[1]{0}', space=sflag, size = 0x4, scoped, tag = 'scoped memory for tpu_custom_call.1']
    %9 = vsyncpa [#allocation3], 0
    %10 = vsyncpa [#allocation6], 0
    %11 = vsyncpa [#allocation4], 0
    %12 = vsyncpa [#allocation9], 0
    // Predicated region
    $region2: #{tpu_custom_call.1} parent=1 // pred_check
      _
    $region3: #{tpu_custom_call.1} parent=1 // pred_check_branch
      %14 = sbr.rel (0) target = $region5
    $region4: #{tpu_custom_call.1} parent=1 // pred_region
      %s15 = sadd.s32 0, 0
      %s16 = smul.u32 2, %s15
      %18 = vsyncadd [#allocation3], 0
      %s19 = smul.addr %s16, 8
      %s20 = scalar_lea.hbm %s0, %s19
      %s21 = sshll.u32 %s20, 4
      %s22 = int_to_ptr.hbm [resolvable:$true] %s21
      %s23 = sshll.u32 [#allocation2], 4
      %s24 = int_to_ptr.vmem [resolvable:$true] %s23
      %29 = dma.hbm_to_vmem [thread:$0]  %s22, 256, %s24, [#allocation3], 128, 128, 8
    $region5: #{tpu_custom_call.1} parent=1 // pred_fallthru
      _
    // Predicated region
    $region6: #{tpu_custom_call.1} parent=1 // pred_check
      _
    $region7: #{tpu_custom_call.1} parent=1 // pred_check_branch
      %31 = sbr.rel (0) target = $region9
    $region8: #{tpu_custom_call.1} parent=1 // pred_region
      %s32 = sadd.s32 0, 0
      %s33 = smul.u32 2, %s32
      %35 = vsyncadd [#allocation6], 0
      %s36 = smul.addr %s33, 8
      %s37 = scalar_lea.hbm %s1, %s36
      %s38 = sshll.u32 %s37, 4
      %s39 = int_to_ptr.hbm [resolvable:$true] %s38
      %s40 = sshll.u32 [#allocation5], 4
      %s41 = int_to_ptr.vmem [resolvable:$true] %s40
      %46 = dma.hbm_to_vmem [thread:$0]  %s39, 256, %s41, [#allocation6], 128, 128, 8
    $region9: #{tpu_custom_call.1} parent=1 // pred_fallthru
      _
    // Predicated region
    $region10: #{tpu_custom_call.1} parent=1 // pred_check
      _
    $region11: #{tpu_custom_call.1} parent=1 // pred_check_branch
      %48 = sbr.rel (0) target = $region13
    $region12: #{tpu_custom_call.1} parent=1 // pred_region
      %50 = dma.done [#allocation3], 256
    $region13: #{tpu_custom_call.1} parent=1 // pred_fallthru
      _
    // Predicated region
    $region14: #{tpu_custom_call.1} parent=1 // pred_check
      _
    $region15: #{tpu_custom_call.1} parent=1 // pred_check_branch
      %52 = sbr.rel (0) target = $region17
    $region16: #{tpu_custom_call.1} parent=1 // pred_region
      %54 = dma.done [#allocation6], 256
    $region17: #{tpu_custom_call.1} parent=1 // pred_fallthru
      _
    %s55 = sadd.s32 0, 0
    %s56 = smul.u32 2, %s55
    %s57 = sadd.s32 0, 0
    %s58 = smul.u32 2, %s57
    %p59 = scmp.eq.s32.totalorder 0, 0
    // Predicated region
    $region18: #{tpu_custom_call.1} parent=1 // pred_check
      %p60 = pneg %p59
    $region19: #{tpu_custom_call.1} parent=1 // pred_check_branch
      %62 = sbr.rel (%p60) target = $region21
    $region20: #{tpu_custom_call.1} parent=1 // pred_region
      %63 = vst [vmem:[#allocation7] sm:$0xff] 0.0
      %64 = vst [vmem:[#allocation8] sm:$0xff] 0.0
    $region21: #{tpu_custom_call.1} parent=1 // pred_fallthru
      _
    %v65 = vld [vmem:[#allocation2] sm:$0xff]
    %v66 = vld [vmem:[#allocation2 + $0x8] sm:$0xff]
    %v67 = vld [vmem:[#allocation5] sm:$0xff]
    %v68 = vld [vmem:[#allocation5 + $0x8] sm:$0xff]
    %v69 = vmul.f32 %v65, %v67
    %v70 = vmul.f32 %v66, %v68
    %v71 = vadd.f32 %v65, %v67
    %v72 = vadd.f32 %v66, %v68
    %v73 = vld [vmem:[#allocation7] sm:$0xff]
    %v74 = vadd.f32 %v69, %v70
    %v75 = vadd.f32 %v73, %v74
    %76 = vst [vmem:[#allocation7] sm:$0xff] %v75
    %v77 = vld [vmem:[#allocation8] sm:$0xff]
    %v78 = vadd.f32 %v71, %v72
    %v79 = vadd.f32 %v77, %v78
    %80 = vst [vmem:[#allocation8] sm:$0xff] %v79
    // Predicated region
    $region22: #{tpu_custom_call.1} parent=1 // pred_check
      _
    $region23: #{tpu_custom_call.1} parent=1 // pred_check_branch
      %82 = sbr.rel (0) target = $region25
    $region24: #{tpu_custom_call.1} parent=1 // pred_region
      %84 = vsyncadd [#allocation4], 0
      %s86 = sshll.u32 [#allocation7], 4
      %s87 = int_to_ptr.vmem [resolvable:$true] %s86
      %s88 = sshll.u32 %s2, 4
      %s89 = int_to_ptr.hbm [resolvable:$true] %s88
      %91 = dma.vmem_to_hbm [thread:$0]  %s87, 128, %s89, [#allocation4]
    $region25: #{tpu_custom_call.1} parent=1 // pred_fallthru
      _
    // Predicated region
    $region26: #{tpu_custom_call.1} parent=1 // pred_check
      _
    $region27: #{tpu_custom_call.1} parent=1 // pred_check_branch
      %93 = sbr.rel (0) target = $region29
    $region28: #{tpu_custom_call.1} parent=1 // pred_region
      %95 = vsyncadd [#allocation9], 0
      %s97 = sshll.u32 [#allocation8], 4
      %s98 = int_to_ptr.vmem [resolvable:$true] %s97
      %s99 = sshll.u32 %s3, 4
      %s100 = int_to_ptr.hbm [resolvable:$true] %s99
      %102 = dma.vmem_to_hbm [thread:$0]  %s98, 128, %s100, [#allocation9]
    $region29: #{tpu_custom_call.1} parent=1 // pred_fallthru
      _
    // Predicated region
    $region30: #{tpu_custom_call.1} parent=1 // pred_check
      _
    $region31: #{tpu_custom_call.1} parent=1 // pred_check_branch
      %104 = sbr.rel (0) target = $region33
    $region32: #{tpu_custom_call.1} parent=1 // pred_region
      %106 = dma.done [#allocation4], 128
    $region33: #{tpu_custom_call.1} parent=1 // pred_fallthru
      _
    // Predicated region
    $region34: #{tpu_custom_call.1} parent=1 // pred_check
      _
    $region35: #{tpu_custom_call.1} parent=1 // pred_check_branch
      %108 = sbr.rel (0) target = $region37
    $region36: #{tpu_custom_call.1} parent=1 // pred_region
      %110 = dma.done [#allocation9], 128
    $region37: #{tpu_custom_call.1} parent=1 // pred_fallthru
      _
    %111 = vsyncpa [#allocation3], 1
    %112 = vsyncpa [#allocation6], 1
    %113 = vsyncpa [#allocation4], 1
    %114 = vsyncpa [#allocation9], 1

</llo_original>
